<compile_context>
chip_gen: v5e
topology: v5e:2x2
jax: 0.10.0
libtpu: 0.0.40
codegen_flags: <defaults>
</compile_context>

<pallas_src>
import functools

import jax
import jax.numpy as jnp
from jax.experimental import pallas as pl
from jax.experimental.pallas import tpu as pltpu

_LANE = 128                      # lane width
_ACC_R = 128                     # accumulator rows; also block-row granularity (multiple of all
                                 #   min sublane tiles: 8 f32 / 16 bf16 / 32 int8)
_MAX_BLOCK_R = 8192              # 8192 * 128 * 4B = 4 MiB f32 per input per grid step
_NUM_SHARDS = 2                  # leading "parallel" grid axis -> the 2 TensorCores on v7x
_VMEM_LIMIT = 40 * 1024 * 1024   # explicit scoped-VMEM cap; fits v7x 64 MiB physical with headroom


def _round_up(x, m):
    return ((x + m - 1) // m) * m


def _loss_kernel(pred_ref, targ_ref, out_ref, acc_ref, *,
                 loss_type, block_r, n_blocks, blocks_per_shard, rows_last):
    c = pl.program_id(0)                  # shard (TensorCore on v7x)
    j = pl.program_id(1)                  # block within this shard
    g = c * blocks_per_shard + j          # global block index

    @pl.when(j == 0)
    def _():
        acc_ref[...] = jnp.zeros_like(acc_ref)

    def elemwise(p, t):
        d = p.astype(jnp.float32) - t.astype(jnp.float32)
        return d * d if loss_type == "l2" else jnp.abs(d)

    def fold_full():
        v = elemwise(pred_ref[...], targ_ref[...])
        acc_ref[...] += jnp.sum(v.reshape(block_r // _ACC_R, _ACC_R, _LANE), axis=0)

    if rows_last == block_r:
        # Every block is full; only skip the clamped out-of-range trailing steps of the last shard.
        @pl.when(g < n_blocks)
        def _():
            fold_full()
    else:
        @pl.when(g < n_blocks - 1)
        def _():
            fold_full()

        # Ragged last block (cold path, runs once): static slices over the valid rows only;
        # trailing garbage rows of the partial block are never read (NaN/Inf-safe).
        @pl.when(g == n_blocks - 1)
        def _():
            v = elemwise(pred_ref[0:rows_last, :], targ_ref[0:rows_last, :])
            full = (rows_last // _ACC_R) * _ACC_R
            if full:
                acc_ref[...] += jnp.sum(
                    v[0:full].reshape(full // _ACC_R, _ACC_R, _LANE), axis=0)
            sliver = rows_last - full
            if sliver:
                acc_ref[0:sliver, :] += v[full:rows_last, :]

    # One cross-lane/sublane reduce + scalar SMEM store per shard.
    @pl.when(j == blocks_per_shard - 1)
    def _():
        out_ref[0, 0] = jnp.sum(acc_ref[...])


def rnn_loss(pred, target, loss="l2"):
    """Pallas equivalent of RNNLoss.forward(pred, target, loss)."""
    if loss not in ("l2", "l1"):
        raise ValueError(f"unsupported loss: {loss}")

    p = pred.reshape(-1)
    t = target.reshape(-1)
    n = p.size
    if n == 0:
        return jnp.float32(jnp.nan)       # matches F.mse_loss / F.l1_loss on empty input

    rem = n % _LANE
    n_aligned = n - rem

    # <=127-element tail for non-lane-aligned n: tiny plain-JAX sum (no padded full-array copies).
    tail_sum = None
    if rem:
        dt = p[n_aligned:].astype(jnp.float32) - t[n_aligned:].astype(jnp.float32)
        tail_sum = jnp.sum(dt * dt) if loss == "l2" else jnp.sum(jnp.abs(dt))
    if n_aligned == 0:
        return tail_sum / jnp.float32(n)

    rows = n_aligned // _LANE
    pb = (p if rem == 0 else p[:n_aligned]).reshape(rows, _LANE)
    tb = (t if rem == 0 else t[:n_aligned]).reshape(rows, _LANE)

    # Block rows: multiple of _ACC_R (hence of every dtype's min sublane tile), capped at 4 MiB f32.
    block_r = min(_MAX_BLOCK_R, _round_up(rows, _ACC_R))
    assert block_r % _ACC_R == 0
    n_blocks = pl.cdiv(rows, block_r)
    num_shards = _NUM_SHARDS if n_blocks >= _NUM_SHARDS else 1
    bps = pl.cdiv(n_blocks, num_shards)                  # blocks per shard
    rows_last = rows - (n_blocks - 1) * block_r          # valid rows of the (maybe ragged) last block

    kernel = functools.partial(
        _loss_kernel, loss_type=loss, block_r=block_r, n_blocks=n_blocks,
        blocks_per_shard=bps, rows_last=rows_last)

    def in_map(c, j):
        # Clamp so the skipped trailing steps of the last shard never DMA past the array end.
        return (jnp.minimum(c * bps + j, n_blocks - 1), 0)

    partials = pl.pallas_call(
        kernel,
        out_shape=jax.ShapeDtypeStruct((num_shards, 1), jnp.float32),
        grid=(num_shards, bps),
        in_specs=[pl.BlockSpec((block_r, _LANE), in_map),
                  pl.BlockSpec((block_r, _LANE), in_map)],
        out_specs=pl.BlockSpec((1, 1), lambda c, j: (c, 0), memory_space=pltpu.SMEM),
        scratch_shapes=[pltpu.VMEM((_ACC_R, _LANE), jnp.float32)],
        compiler_params=pltpu.CompilerParams(
            dimension_semantics=("parallel", "arbitrary"),
            vmem_limit_bytes=_VMEM_LIMIT),
    )(pb, tb)

    total = jnp.sum(partials)
    if tail_sum is not None:
        total = total + tail_sum
    # Mean over the ORIGINAL element count.
    return total / jnp.float32(n)


if __name__ == "__main__":
    key = jax.random.PRNGKey(0)
    k1, k2, k3, k4, k5, k6 = jax.random.split(key, 6)

    def ref_loss(p, t, loss):
        d = p.reshape(-1).astype(jnp.float32) - t.reshape(-1).astype(jnp.float32)
        return jnp.mean(d * d) if loss == "l2" else jnp.mean(jnp.abs(d))

    # Small (batch, features) case consistent with the module (lane-aligned, single block).
    pred = jax.random.normal(k1, (2, 64), dtype=jnp.float32)
    target = jax.random.normal(k2, (2, 64), dtype=jnp.float32)
    for loss_name in ("l2", "l1"):
        out = jax.block_until_ready(rnn_loss(pred, target, loss=loss_name))
        ref = ref_loss(pred, target, loss_name)
        assert jnp.allclose(out, ref, rtol=1e-5, atol=1e-6), (loss_name, out, ref)

    # Ragged element count (n % 128 != 0): exercises the plain-JAX tail + in-kernel sliver path.
    pred_r = jax.random.normal(k3, (3, 200), dtype=jnp.float32)
    target_r = jax.random.normal(k4, (3, 200), dtype=jnp.float32)
    out_r = jax.block_until_ready(rnn_loss(pred_r, target_r, loss="l2"))
    ref_r = ref_loss(pred_r, target_r, "l2")
    assert jnp.allclose(out_r, ref_r, rtol=1e-5, atol=1e-6), (out_r, ref_r)

    # Larger streaming case: multiple grid blocks, 2-shard parallel axis, ragged last block.
    pred_b = jax.random.normal(k5, (136, 8192), dtype=jnp.float32)
    target_b = jax.random.normal(k6, (136, 8192), dtype=jnp.float32)
    out_b = jax.block_until_ready(rnn_loss(pred_b, target_b, loss="l1"))
    ref_b = ref_loss(pred_b, target_b, "l1")
    assert jnp.allclose(out_b, ref_b, rtol=1e-4, atol=1e-6), (out_b, ref_b)

    print("KERNEL_OK")
</pallas_src>

<mosaic_0001>
module attributes {stable_mosaic.version = 11 : i64} {
  func.func @_loss_kernel(%arg0: i32, %arg1: i32, %arg2: memref<128x128xf32, #tpu.memory_space<vmem>>, %arg3: memref<128x128xf32, #tpu.memory_space<vmem>>, %arg4: memref<1x1xf32, #tpu.memory_space<smem>>, %arg5: memref<128x128xf32, #tpu.memory_space<vmem>>) attributes {dimension_semantics = [#tpu.dimension_semantics<parallel>, #tpu.dimension_semantics<arbitrary>], iteration_bounds = array<i64: 1, 1>, scalar_prefetch = 0 : i64, scratch_operands = 1 : i64, tpu.core_type = #tpu.core_type<tc>, window_params = [{transform_indices = @transform_0, window_bounds = array<i64: 128, 128>}, {transform_indices = @transform_1, window_bounds = array<i64: 128, 128>}, {transform_indices = @transform_2, window_bounds = array<i64: 1, 1>}]} {
    %c1_i32 = arith.constant 1 : i32
    %0 = arith.muli %arg0, %c1_i32 : i32
    %1 = arith.addi %0, %arg1 : i32
    %c0_i32 = arith.constant 0 : i32
    %2 = arith.cmpi eq, %arg1, %c0_i32 : i32
    %3 = arith.extui %2 : i1 to i32
    %c0_i32_0 = arith.constant 0 : i32
    %4 = arith.cmpi ne, %3, %c0_i32_0 : i32
    scf.if %4 {
      %cst = arith.constant 0.000000e+00 : f32
      %14 = vector.broadcast %cst : f32 to vector<128x128xf32>
      %c0 = arith.constant 0 : index
      %c0_7 = arith.constant 0 : index
      %15 = vector.load %arg5[%c0, %c0_7] : memref<128x128xf32, #tpu.memory_space<vmem>>, vector<128x128xf32>
      tpu.vector_store %arg5[%c0, %c0_7], %14 {strides = array<i32>} : memref<128x128xf32, #tpu.memory_space<vmem>>, vector<128x128xf32>,
    } else {
    }
    %c0_i32_1 = arith.constant 0 : i32
    %5 = arith.cmpi slt, %1, %c0_i32_1 : i32
    %6 = arith.extui %5 : i1 to i32
    %c0_i32_2 = arith.constant 0 : i32
    %7 = arith.cmpi ne, %6, %c0_i32_2 : i32
    scf.if %7 {
      %c0 = arith.constant 0 : index
      %c0_7 = arith.constant 0 : index
      %14 = vector.load %arg2[%c0, %c0_7] : memref<128x128xf32, #tpu.memory_space<vmem>>, vector<128x128xf32>
      %c0_8 = arith.constant 0 : index
      %c0_9 = arith.constant 0 : index
      %15 = vector.load %arg3[%c0_8, %c0_9] : memref<128x128xf32, #tpu.memory_space<vmem>>, vector<128x128xf32>
      %16 = arith.subf %14, %15 : vector<128x128xf32>
      %17 = arith.mulf %16, %16 : vector<128x128xf32>
      %c0_10 = arith.constant 0 : index
      %c0_11 = arith.constant 0 : index
      %18 = vector.load %arg5[%c0_10, %c0_11] : memref<128x128xf32, #tpu.memory_space<vmem>>, vector<128x128xf32>
      %19 = vector.shape_cast %17 : vector<128x128xf32> to vector<1x128x128xf32>
      %cst = arith.constant dense<0.000000e+00> : vector<128x128xf32>
      %20 = vector.multi_reduction <add>, %19, %cst [0] : vector<1x128x128xf32> to vector<128x128xf32>
      %21 = arith.addf %18, %20 : vector<128x128xf32>
      %c0_12 = arith.constant 0 : index
      %c0_13 = arith.constant 0 : index
      %22 = vector.load %arg5[%c0_12, %c0_13] : memref<128x128xf32, #tpu.memory_space<vmem>>, vector<128x128xf32>
      tpu.vector_store %arg5[%c0_12, %c0_13], %21 {strides = array<i32>} : memref<128x128xf32, #tpu.memory_space<vmem>>, vector<128x128xf32>,
    } else {
    }
    %c0_i32_3 = arith.constant 0 : i32
    %8 = arith.cmpi eq, %1, %c0_i32_3 : i32
    %9 = arith.extui %8 : i1 to i32
    %c0_i32_4 = arith.constant 0 : i32
    %10 = arith.cmpi ne, %9, %c0_i32_4 : i32
    scf.if %10 {
      %c0 = arith.constant 0 : index
      %c0_7 = arith.constant 0 : index
      %14 = vector.load %arg2[%c0, %c0_7] : memref<128x128xf32, #tpu.memory_space<vmem>>, vector<1x128xf32>
      %c0_8 = arith.constant 0 : index
      %c0_9 = arith.constant 0 : index
      %15 = vector.load %arg3[%c0_8, %c0_9] : memref<128x128xf32, #tpu.memory_space<vmem>>, vector<1x128xf32>
      %16 = arith.subf %14, %15 : vector<1x128xf32>
      %17 = arith.mulf %16, %16 : vector<1x128xf32>
      %c0_10 = arith.constant 0 : index
      %c0_11 = arith.constant 0 : index
      %18 = vector.load %arg5[%c0_10, %c0_11] : memref<128x128xf32, #tpu.memory_space<vmem>>, vector<1x128xf32>
      %19 = arith.addf %18, %17 : vector<1x128xf32>
      %c0_12 = arith.constant 0 : index
      %c0_13 = arith.constant 0 : index
      %20 = vector.load %arg5[%c0_12, %c0_13] : memref<128x128xf32, #tpu.memory_space<vmem>>, vector<1x128xf32>
      tpu.vector_store %arg5[%c0_12, %c0_13], %19 {strides = array<i32>} : memref<128x128xf32, #tpu.memory_space<vmem>>, vector<1x128xf32>,
    } else {
    }
    %c0_i32_5 = arith.constant 0 : i32
    %11 = arith.cmpi eq, %arg1, %c0_i32_5 : i32
    %12 = arith.extui %11 : i1 to i32
    %c0_i32_6 = arith.constant 0 : i32
    %13 = arith.cmpi ne, %12, %c0_i32_6 : i32
    scf.if %13 {
      %c0 = arith.constant 0 : index
      %c0_7 = arith.constant 0 : index
      %14 = vector.load %arg5[%c0, %c0_7] : memref<128x128xf32, #tpu.memory_space<vmem>>, vector<128x128xf32>
      %15 = vector.shape_cast %14 : vector<128x128xf32> to vector<1x128x128xf32>
      %cst = arith.constant dense<0.000000e+00> : vector<1xf32>
      %16 = vector.multi_reduction <add>, %15, %cst [1, 2] : vector<1x128x128xf32> to vector<1xf32>
      %17 = vector.shape_cast %16 : vector<1xf32> to vector<1x1x1xf32>
      %18 = vector.extract %17[0, 0, 0] : f32 from vector<1x1x1xf32>
      %c0_8 = arith.constant 0 : index
      %c0_9 = arith.constant 0 : index
      %19 = memref.load %arg4[%c0_8, %c0_9] : memref<1x1xf32, #tpu.memory_space<smem>>
      memref.store %18, %arg4[%c0_8, %c0_9] : memref<1x1xf32, #tpu.memory_space<smem>>
    } else {
    }
    return
  }
  func.func @transform_0(%arg0: i32, %arg1: i32) -> (i32, i32) {
    %c1_i32 = arith.constant 1 : i32
    %0 = arith.muli %arg0, %c1_i32 : i32
    %1 = arith.addi %0, %arg1 : i32
    %c0_i32 = arith.constant 0 : i32
    %2 = arith.minsi %1, %c0_i32 : i32
    %c0_i32_0 = arith.constant 0 : i32
    %c0_i32_1 = arith.constant 0 : i32
    return %2, %c0_i32_0 : i32, i32
  }
  func.func @transform_1(%arg0: i32, %arg1: i32) -> (i32, i32) {
    %c1_i32 = arith.constant 1 : i32
    %0 = arith.muli %arg0, %c1_i32 : i32
    %1 = arith.addi %0, %arg1 : i32
    %c0_i32 = arith.constant 0 : i32
    %2 = arith.minsi %1, %c0_i32 : i32
    %c0_i32_0 = arith.constant 0 : i32
    %c0_i32_1 = arith.constant 0 : i32
    return %2, %c0_i32_0 : i32, i32
  }
  func.func @transform_2(%arg0: i32, %arg1: i32) -> (i32, i32) {
    %c0_i32 = arith.constant 0 : i32
    %c0_i32_0 = arith.constant 0 : i32
    return %arg0, %c0_i32 : i32, i32
  }
}

</mosaic_0001>

<llo_original>
// kernel: tpu_custom_call.1
$region0: #{tpu_custom_call.1}
  #allocation0 [shape = 'u32[]', space=smem, size = 0x4, offset = 0x4, fixed_abs, tag = 'smem constant byte address 0x4 - core index']
  #allocation1 [shape = 'u32[72,128]{1,0:T(1,128)}', space=vmem, size = 0x9000, scoped, tag = 'internal scratch']
  #allocation2 [shape = 'f32[128,128]{1,0:T(8,128)}', space=vmem, size = 0x10000, scoped, tag = 'scratch operand']
  %s0 = inlined_call_operand.hbm [shape: f32[1,128], index: 0, kind: input, shape index: {}]
  %s1 = inlined_call_operand.hbm [shape: f32[1,128], index: 1, kind: input, shape index: {}]
  %s2 = inlined_call_operand.hbm [shape: f32[1,1], index: 2, kind: output, shape index: {}]
  %s3 = sld [smem:[#allocation0]]
  $region42: #{tpu_custom_call.1} parent=0
    _
  %s5 = ssub.s32 1, %s3
  %s6 = scalar_select 0, %s5, %s3
  $region1: #{tpu_custom_call.1} parent=0
    #allocation3 [shape = 'u8[65536]{0}', space=vmem, size = 0x10000, scoped, tag = 'input window, operand 0, single buffered']
    #allocation4 [shape = 's32[1]{0}', space=sflag, size = 0x4, scoped, tag = 'scoped memory for tpu_custom_call.1']
    #allocation5 [shape = 's32[1]{0}', space=sflag, size = 0x4, scoped, tag = 'scoped memory for tpu_custom_call.1']
    #allocation6 [shape = 'u8[65536]{0}', space=vmem, size = 0x10000, scoped, tag = 'input window, operand 1, single buffered']
    #allocation7 [shape = 's32[1]{0}', space=sflag, size = 0x4, scoped, tag = 'scoped memory for tpu_custom_call.1']
    #allocation8 [shape = 'u8[512]{0}', space=smem, size = 0x200, scoped, tag = 'output window, operand 0, single buffered']
    %7 = vsyncpa [#allocation4], 0
    %8 = vsyncpa [#allocation7], 0
    %9 = vsyncpa [#allocation5], 0
    // Predicated region
    $region2: #{tpu_custom_call.1} parent=1 // pred_check
      _
    $region3: #{tpu_custom_call.1} parent=1 // pred_check_branch
      %11 = sbr.rel (0) target = $region5
    $region4: #{tpu_custom_call.1} parent=1 // pred_region
      %s12 = sadd.s32 0, 0
      %p13 = scmp.lt.s32.totalorder %s12, 0
      %s14 = scalar_select %p13, %s12, 0
      %s15 = smul.u32 128, %s14
      %s16 = ssub.s32 1, %s15
      %s17 = ssub.s32 128, %s16
      %s18 = sshll.u32 %s17, 4
      %19 = vsyncadd [#allocation4], %s18
      %p20 = scmp.ne.s32.totalorder 0, %s16
      %s21 = scalar_lea.hbm %s0, %s15
      %s22 = sshll.u32 %s21, 4
      %s23 = int_to_ptr.hbm [resolvable:$true] %s22
      %s24 = sshll.u32 [#allocation3], 4
      %s25 = int_to_ptr.vmem [resolvable:$true] %s24
      %s26 = sshll.u32 %s16, 4
      %30 = dma.hbm_to_vmem [thread:$0]  (%p20), %s23, %s26, %s25, [#allocation4], 16, 16, 1
    $region5: #{tpu_custom_call.1} parent=1 // pred_fallthru
      _
    // Predicated region
    $region6: #{tpu_custom_call.1} parent=1 // pred_check
      _
    $region7: #{tpu_custom_call.1} parent=1 // pred_check_branch
      %32 = sbr.rel (0) target = $region9
    $region8: #{tpu_custom_call.1} parent=1 // pred_region
      %s33 = sadd.s32 0, 0
      %p34 = scmp.lt.s32.totalorder %s33, 0
      %s35 = scalar_select %p34, %s33, 0
      %s36 = smul.u32 128, %s35
      %s37 = ssub.s32 1, %s36
      %s38 = ssub.s32 128, %s37
      %s39 = sshll.u32 %s38, 4
      %40 = vsyncadd [#allocation7], %s39
      %p41 = scmp.ne.s32.totalorder 0, %s37
      %s42 = scalar_lea.hbm %s1, %s36
      %s43 = sshll.u32 %s42, 4
      %s44 = int_to_ptr.hbm [resolvable:$true] %s43
      %s45 = sshll.u32 [#allocation6], 4
      %s46 = int_to_ptr.vmem [resolvable:$true] %s45
      %s47 = sshll.u32 %s37, 4
      %51 = dma.hbm_to_vmem [thread:$0]  (%p41), %s44, %s47, %s46, [#allocation7], 16, 16, 1
    $region9: #{tpu_custom_call.1} parent=1 // pred_fallthru
      _
    // Predicated region
    $region10: #{tpu_custom_call.1} parent=1 // pred_check
      _
    $region11: #{tpu_custom_call.1} parent=1 // pred_check_branch
      %53 = sbr.rel (0) target = $region13
    $region12: #{tpu_custom_call.1} parent=1 // pred_region
      %55 = dma.done [#allocation4], 2048
    $region13: #{tpu_custom_call.1} parent=1 // pred_fallthru
      _
    // Predicated region
    $region14: #{tpu_custom_call.1} parent=1 // pred_check
      _
    $region15: #{tpu_custom_call.1} parent=1 // pred_check_branch
      %57 = sbr.rel (0) target = $region17
    $region16: #{tpu_custom_call.1} parent=1 // pred_region
      %59 = dma.done [#allocation7], 2048
    $region17: #{tpu_custom_call.1} parent=1 // pred_fallthru
      _
    %s60 = sadd.s32 0, 0
    %p61 = scmp.lt.s32.totalorder %s60, 0
    %s62 = scalar_select %p61, %s60, 0
    %s63 = smul.u32 128, %s62
    %s64 = ssub.s32 1, %s63
    %s65 = sadd.s32 0, 0
    %p66 = scmp.lt.s32.totalorder %s65, 0
    %s67 = scalar_select %p66, %s65, 0
    %s68 = smul.u32 128, %s67
    %s69 = ssub.s32 1, %s68
    %s70 = sadd.s32 0, 0
    %p71 = scmp.eq.s32.totalorder 0, 0
    // Predicated region
    $region18: #{tpu_custom_call.1} parent=1 // pred_check
      %p72 = pneg %p71
    $region19: #{tpu_custom_call.1} parent=1 // pred_check_branch
      %74 = sbr.rel (%p72) target = $region21
    $region20: #{tpu_custom_call.1} parent=1 // pred_region
      %75 = vst [vmem:[#allocation2] sm:$0xff] 0.0
      %76 = vst [vmem:[#allocation2 + $0x8] sm:$0xff] 0.0
      %77 = vst [vmem:[#allocation2 + $0x10] sm:$0xff] 0.0
      %78 = vst [vmem:[#allocation2 + $0x18] sm:$0xff] 0.0
      %79 = vst [vmem:[#allocation2 + $0x20] sm:$0xff] 0.0
      %80 = vst [vmem:[#allocation2 + $0x28] sm:$0xff] 0.0
      %81 = vst [vmem:[#allocation2 + $0x30] sm:$0xff] 0.0
      %82 = vst [vmem:[#allocation2 + $0x38] sm:$0xff] 0.0
      %83 = vst [vmem:[#allocation2 + $0x40] sm:$0xff] 0.0
      %84 = vst [vmem:[#allocation2 + $0x48] sm:$0xff] 0.0
      %85 = vst [vmem:[#allocation2 + $0x50] sm:$0xff] 0.0
      %86 = vst [vmem:[#allocation2 + $0x58] sm:$0xff] 0.0
      %87 = vst [vmem:[#allocation2 + $0x60] sm:$0xff] 0.0
      %88 = vst [vmem:[#allocation2 + $0x68] sm:$0xff] 0.0
      %89 = vst [vmem:[#allocation2 + $0x70] sm:$0xff] 0.0
      %90 = vst [vmem:[#allocation2 + $0x78] sm:$0xff] 0.0
    $region21: #{tpu_custom_call.1} parent=1 // pred_fallthru
      _
    %p91 = scmp.lt.s32.totalorder %s70, 0
    // Predicated region
    $region22: #{tpu_custom_call.1} parent=1 // pred_check
      %p92 = pneg %p91
    $region23: #{tpu_custom_call.1} parent=1 // pred_check_branch
      %94 = sbr.rel (%p92) target = $region25
    $region24: #{tpu_custom_call.1} parent=1 // pred_region
      %v95 = vld [vmem:[#allocation3] sm:$0xff]
      %v96 = vld [vmem:[#allocation3 + $0x8] sm:$0xff]
      %v97 = vld [vmem:[#allocation3 + $0x10] sm:$0xff]
      %v98 = vld [vmem:[#allocation3 + $0x18] sm:$0xff]
      %v99 = vld [vmem:[#allocation3 + $0x20] sm:$0xff]
      %v100 = vld [vmem:[#allocation3 + $0x28] sm:$0xff]
      %v101 = vld [vmem:[#allocation3 + $0x30] sm:$0xff]
      %v102 = vld [vmem:[#allocation3 + $0x38] sm:$0xff]
      %v103 = vld [vmem:[#allocation3 + $0x40] sm:$0xff]
      %v104 = vld [vmem:[#allocation3 + $0x48] sm:$0xff]
      %v105 = vld [vmem:[#allocation3 + $0x50] sm:$0xff]
      %v106 = vld [vmem:[#allocation3 + $0x58] sm:$0xff]
      %v107 = vld [vmem:[#allocation3 + $0x60] sm:$0xff]
      %v108 = vld [vmem:[#allocation3 + $0x68] sm:$0xff]
      %v109 = vld [vmem:[#allocation3 + $0x70] sm:$0xff]
      %v110 = vld [vmem:[#allocation3 + $0x78] sm:$0xff]
      %v111 = vld [vmem:[#allocation6] sm:$0xff]
      %v112 = vld [vmem:[#allocation6 + $0x8] sm:$0xff]
      %v113 = vld [vmem:[#allocation6 + $0x10] sm:$0xff]
      %v114 = vld [vmem:[#allocation6 + $0x18] sm:$0xff]
      %v115 = vld [vmem:[#allocation6 + $0x20] sm:$0xff]
      %v116 = vld [vmem:[#allocation6 + $0x28] sm:$0xff]
      %v117 = vld [vmem:[#allocation6 + $0x30] sm:$0xff]
      %v118 = vld [vmem:[#allocation6 + $0x38] sm:$0xff]
      %v119 = vld [vmem:[#allocation6 + $0x40] sm:$0xff]
      %v120 = vld [vmem:[#allocation6 + $0x48] sm:$0xff]
      %v121 = vld [vmem:[#allocation6 + $0x50] sm:$0xff]
      %v122 = vld [vmem:[#allocation6 + $0x58] sm:$0xff]
      %v123 = vld [vmem:[#allocation6 + $0x60] sm:$0xff]
      %v124 = vld [vmem:[#allocation6 + $0x68] sm:$0xff]
      %v125 = vld [vmem:[#allocation6 + $0x70] sm:$0xff]
      %v126 = vld [vmem:[#allocation6 + $0x78] sm:$0xff]
      %v127 = vsub.f32 %v95, %v111
      %v128 = vsub.f32 %v96, %v112
      %v129 = vsub.f32 %v97, %v113
      %v130 = vsub.f32 %v98, %v114
      %v131 = vsub.f32 %v99, %v115
      %v132 = vsub.f32 %v100, %v116
      %v133 = vsub.f32 %v101, %v117
      %v134 = vsub.f32 %v102, %v118
      %v135 = vsub.f32 %v103, %v119
      %v136 = vsub.f32 %v104, %v120
      %v137 = vsub.f32 %v105, %v121
      %v138 = vsub.f32 %v106, %v122
      %v139 = vsub.f32 %v107, %v123
      %v140 = vsub.f32 %v108, %v124
      %v141 = vsub.f32 %v109, %v125
      %v142 = vsub.f32 %v110, %v126
      %v143 = vmul.f32 %v127, %v127
      %v144 = vmul.f32 %v128, %v128
      %v145 = vmul.f32 %v129, %v129
      %v146 = vmul.f32 %v130, %v130
      %v147 = vmul.f32 %v131, %v131
      %v148 = vmul.f32 %v132, %v132
      %v149 = vmul.f32 %v133, %v133
      %v150 = vmul.f32 %v134, %v134
      %v151 = vmul.f32 %v135, %v135
      %v152 = vmul.f32 %v136, %v136
      %v153 = vmul.f32 %v137, %v137
      %v154 = vmul.f32 %v138, %v138
      %v155 = vmul.f32 %v139, %v139
      %v156 = vmul.f32 %v140, %v140
      %v157 = vmul.f32 %v141, %v141
      %v158 = vmul.f32 %v142, %v142
      %v159 = vld [vmem:[#allocation2] sm:$0xff]
      %v160 = vld [vmem:[#allocation2 + $0x8] sm:$0xff]
      %v161 = vld [vmem:[#allocation2 + $0x10] sm:$0xff]
      %v162 = vld [vmem:[#allocation2 + $0x18] sm:$0xff]
      %v163 = vld [vmem:[#allocation2 + $0x20] sm:$0xff]
      %v164 = vld [vmem:[#allocation2 + $0x28] sm:$0xff]
      %v165 = vld [vmem:[#allocation2 + $0x30] sm:$0xff]
      %v166 = vld [vmem:[#allocation2 + $0x38] sm:$0xff]
      %v167 = vld [vmem:[#allocation2 + $0x40] sm:$0xff]
      %v168 = vld [vmem:[#allocation2 + $0x48] sm:$0xff]
      %v169 = vld [vmem:[#allocation2 + $0x50] sm:$0xff]
      %v170 = vld [vmem:[#allocation2 + $0x58] sm:$0xff]
      %v171 = vld [vmem:[#allocation2 + $0x60] sm:$0xff]
      %v172 = vld [vmem:[#allocation2 + $0x68] sm:$0xff]
      %v173 = vld [vmem:[#allocation2 + $0x70] sm:$0xff]
      %v174 = vld [vmem:[#allocation2 + $0x78] sm:$0xff]
      %v175 = vadd.f32 %v143, 0.0
      %v176 = vadd.f32 %v144, 0.0
      %v177 = vadd.f32 %v145, 0.0
      %v178 = vadd.f32 %v146, 0.0
      %v179 = vadd.f32 %v147, 0.0
      %v180 = vadd.f32 %v148, 0.0
      %v181 = vadd.f32 %v149, 0.0
      %v182 = vadd.f32 %v150, 0.0
      %v183 = vadd.f32 %v151, 0.0
      %v184 = vadd.f32 %v152, 0.0
      %v185 = vadd.f32 %v153, 0.0
      %v186 = vadd.f32 %v154, 0.0
      %v187 = vadd.f32 %v155, 0.0
      %v188 = vadd.f32 %v156, 0.0
      %v189 = vadd.f32 %v157, 0.0
      %v190 = vadd.f32 %v158, 0.0
      %v191 = vadd.f32 %v159, %v175
      %v192 = vadd.f32 %v160, %v176
      %v193 = vadd.f32 %v161, %v177
      %v194 = vadd.f32 %v162, %v178
      %v195 = vadd.f32 %v163, %v179
      %v196 = vadd.f32 %v164, %v180
      %v197 = vadd.f32 %v165, %v181
      %v198 = vadd.f32 %v166, %v182
      %v199 = vadd.f32 %v167, %v183
      %v200 = vadd.f32 %v168, %v184
      %v201 = vadd.f32 %v169, %v185
      %v202 = vadd.f32 %v170, %v186
      %v203 = vadd.f32 %v171, %v187
      %v204 = vadd.f32 %v172, %v188
      %v205 = vadd.f32 %v173, %v189
      %v206 = vadd.f32 %v174, %v190
      %207 = vst [vmem:[#allocation2] sm:$0xff] %v191
      %208 = vst [vmem:[#allocation2 + $0x8] sm:$0xff] %v192
      %209 = vst [vmem:[#allocation2 + $0x10] sm:$0xff] %v193
      %210 = vst [vmem:[#allocation2 + $0x18] sm:$0xff] %v194
      %211 = vst [vmem:[#allocation2 + $0x20] sm:$0xff] %v195
      %212 = vst [vmem:[#allocation2 + $0x28] sm:$0xff] %v196
      %213 = vst [vmem:[#allocation2 + $0x30] sm:$0xff] %v197
      %214 = vst [vmem:[#allocation2 + $0x38] sm:$0xff] %v198
      %215 = vst [vmem:[#allocation2 + $0x40] sm:$0xff] %v199
      %216 = vst [vmem:[#allocation2 + $0x48] sm:$0xff] %v200
      %217 = vst [vmem:[#allocation2 + $0x50] sm:$0xff] %v201
      %218 = vst [vmem:[#allocation2 + $0x58] sm:$0xff] %v202
      %219 = vst [vmem:[#allocation2 + $0x60] sm:$0xff] %v203
      %220 = vst [vmem:[#allocation2 + $0x68] sm:$0xff] %v204
      %221 = vst [vmem:[#allocation2 + $0x70] sm:$0xff] %v205
      %222 = vst [vmem:[#allocation2 + $0x78] sm:$0xff] %v206
    $region25: #{tpu_custom_call.1} parent=1 // pred_fallthru
      _
    %p223 = scmp.eq.s32.totalorder %s70, 0
    // Predicated region
    $region26: #{tpu_custom_call.1} parent=1 // pred_check
      %p224 = pneg %p223
    $region27: #{tpu_custom_call.1} parent=1 // pred_check_branch
      %226 = sbr.rel (%p224) target = $region29
    $region28: #{tpu_custom_call.1} parent=1 // pred_region
      %v227 = vld [vmem:[#allocation3] sm:$0x1]
      %v228 = vld [vmem:[#allocation6] sm:$0x1]
      %v229 = vsub.f32 %v227, %v228
      %v230 = vmul.f32 %v229, %v229
      %v231 = vld [vmem:[#allocation2] sm:$0x1]
      %v232 = vadd.f32 %v231, %v230
      %233 = vst [vmem:[#allocation2] sm:$0x1] %v232
    $region29: #{tpu_custom_call.1} parent=1 // pred_fallthru
      _
    // Predicated region
    $region30: #{tpu_custom_call.1} parent=1 // pred_check
      %p234 = pneg %p71
    $region31: #{tpu_custom_call.1} parent=1 // pred_check_branch
      %236 = sbr.rel (%p234) target = $region33
    $region32: #{tpu_custom_call.1} parent=1 // pred_region
      %v237 = vld [vmem:[#allocation2] sm:$0xff]
      %v238 = vld [vmem:[#allocation2 + $0x8] sm:$0xff]
      %v239 = vld [vmem:[#allocation2 + $0x10] sm:$0xff]
      %v240 = vld [vmem:[#allocation2 + $0x18] sm:$0xff]
      %v241 = vld [vmem:[#allocation2 + $0x20] sm:$0xff]
      %v242 = vld [vmem:[#allocation2 + $0x28] sm:$0xff]
      %v243 = vld [vmem:[#allocation2 + $0x30] sm:$0xff]
      %v244 = vld [vmem:[#allocation2 + $0x38] sm:$0xff]
      %v245 = vld [vmem:[#allocation2 + $0x40] sm:$0xff]
      %v246 = vld [vmem:[#allocation2 + $0x48] sm:$0xff]
      %v247 = vld [vmem:[#allocation2 + $0x50] sm:$0xff]
      %v248 = vld [vmem:[#allocation2 + $0x58] sm:$0xff]
      %v249 = vld [vmem:[#allocation2 + $0x60] sm:$0xff]
      %v250 = vld [vmem:[#allocation2 + $0x68] sm:$0xff]
      %v251 = vld [vmem:[#allocation2 + $0x70] sm:$0xff]
      %v252 = vld [vmem:[#allocation2 + $0x78] sm:$0xff]
      %v253 = vadd.f32 %v237, %v238
      %v254 = vadd.f32 %v253, %v239
      %v255 = vadd.f32 %v254, %v240
      %v256 = vadd.f32 %v255, %v241
      %v257 = vadd.f32 %v256, %v242
      %v258 = vadd.f32 %v257, %v243
      %v259 = vadd.f32 %v258, %v244
      %v260 = vadd.f32 %v259, %v245
      %v261 = vadd.f32 %v260, %v246
      %v262 = vadd.f32 %v261, %v247
      %v263 = vadd.f32 %v262, %v248
      %v264 = vadd.f32 %v263, %v249
      %v265 = vadd.f32 %v264, %v250
      %v266 = vadd.f32 %v265, %v251
      %v267 = vadd.f32 %v266, %v252
      %268 = vadd.xlane.f32.xlu0 %v267
      %v269 = vpop.xlane.xlu0 %268
      %v270 = vrot.slane %v269, 4
      %v271 = vadd.f32 %v269, %v270
      %v272 = vrot.slane %v271, 2
      %v273 = vadd.f32 %v271, %v272
      %v274 = vrot.slane %v273, 1
      %v275 = vadd.f32 %v273, %v274
      %s276 = vtos %v275
      %s277 = scalar_lea.smem [#allocation8], 0
      %278 = sst [smem:[%s277]] %s276
    $region33: #{tpu_custom_call.1} parent=1 // pred_fallthru
      _
    // Predicated region
    $region34: #{tpu_custom_call.1} parent=1 // pred_check
      _
    $region35: #{tpu_custom_call.1} parent=1 // pred_check_branch
      %280 = sbr.rel (0) target = $region37
    $region36: #{tpu_custom_call.1} parent=1 // pred_region
      %282 = vsyncadd [#allocation5], 0
      %s284 = sshll.u32 %s2, 4
      %s285 = int_to_ptr.hbm [resolvable:$true] %s284
      %287 = dma.smem_to_hbm [#allocation8], 16, %s285, [#allocation5]
    $region37: #{tpu_custom_call.1} parent=1 // pred_fallthru
      _
    // Predicated region
    $region38: #{tpu_custom_call.1} parent=1 // pred_check
      _
    $region39: #{tpu_custom_call.1} parent=1 // pred_check_branch
      %289 = sbr.rel (0) target = $region41
    $region40: #{tpu_custom_call.1} parent=1 // pred_region
      %291 = dma.done [#allocation5], 16
    $region41: #{tpu_custom_call.1} parent=1 // pred_fallthru
      _
    %292 = sfence
    %293 = vsyncpa [#allocation4], 1
    %294 = vsyncpa [#allocation7], 1
    %295 = vsyncpa [#allocation5], 1

</llo_original>
